<compile_context>
chip_gen: v5e
topology: v5e:2x2
jax: 0.10.0
libtpu: 0.0.40
codegen_flags: <defaults>
</compile_context>

<pallas_src>
import math

import jax
import jax.numpy as jnp
from jax.experimental import pallas as pl
from jax.experimental.pallas import tpu as pltpu

_SQRT_2_OVER_PI = math.sqrt(2.0 / math.pi)


def _gelu_kernel(x_ref, o_ref):
    x = x_ref[...]
    # bf16-native compute for bf16 inputs (v6e/v7x bf16 VPU/EUP); f32 otherwise.
    compute_dtype = jnp.bfloat16 if x.dtype == jnp.bfloat16 else jnp.float32
    xf = x.astype(compute_dtype)
    inner = _SQRT_2_OVER_PI * (xf + 0.044715 * (xf * xf * xf))
    y = 0.5 * xf * (1.0 + jnp.tanh(inner))
    o_ref[...] = y.astype(o_ref.dtype)


def gelu(x: jax.Array, *, target_block_bytes: int = 2 << 20,
         max_lane_width: int = 2048) -> jax.Array:
    """Tanh-approximation GELU, elementwise, computed in a Pallas TPU kernel."""
    orig_shape = x.shape
    dtype = x.dtype
    itemsize = jnp.dtype(dtype).itemsize
    total = int(math.prod(orig_shape)) if orig_shape else 1

    # --- Pick a lane width (multiple of 128) that divides the element count so
    # --- we can reshape for free (no pad pass).  Fall back to a padded 1024.
    W = None
    for w in (max_lane_width, 1024, 512, 256, 128):
        if w % 128 == 0 and total % w == 0:
            W = w
            break
    pad = 0
    if W is None:
        W = 1024
        pad = (-total) % W
    padded_total = total + pad
    rows = padded_total // W

    xf = x.reshape(-1)
    if pad:
        xf = jnp.pad(xf, (0, pad))
    x2d = xf.reshape(rows, W)

    # --- Block rows: ~target_block_bytes of input per block, multiple of 8
    # --- (sublane rule).  A single full-extent block is used for small inputs.
    br = max(8, (target_block_bytes // (W * itemsize)) // 8 * 8)
    if br >= rows:
        br = rows                      # full extent: (8,128) rule waived
        grid = (1,)
    else:
        grid = (pl.cdiv(rows, br),)    # ragged edge block handled by Pallas

    block_bytes = br * W * itemsize
    # in + out, double buffered, plus headroom; capped under v7x 64 MiB VMEM.
    vmem_limit = int(min(64 << 20, max(16 << 20, 6 * block_bytes)))

    cost = pl.CostEstimate(
        flops=10 * padded_total,
        transcendentals=padded_total,
        bytes_accessed=2 * padded_total * itemsize,
    )

    out2d = pl.pallas_call(
        _gelu_kernel,
        out_shape=jax.ShapeDtypeStruct((rows, W), dtype),
        grid_spec=pltpu.PrefetchScalarGridSpec(
            num_scalar_prefetch=0,
            grid=grid,
            in_specs=[pl.BlockSpec((br, W), lambda i: (i, 0))],
            out_specs=pl.BlockSpec((br, W), lambda i: (i, 0)),
        ),
        compiler_params=pltpu.CompilerParams(
            dimension_semantics=("parallel",),
            vmem_limit_bytes=vmem_limit,
        ),
        cost_estimate=cost,
    )(x2d)

    out = out2d.reshape(-1)
    if pad:
        out = out[:total]
    return out.reshape(orig_shape)


def _gelu_ref(x):
    xf = x.astype(jnp.float32)
    y = 0.5 * xf * (1.0 + jnp.tanh(_SQRT_2_OVER_PI *
                                   (xf + 0.044715 * jnp.power(xf, 3))))
    return y.astype(x.dtype)


if __name__ == "__main__":
    key = jax.random.PRNGKey(0)
    k1, k2, k3 = jax.random.split(key, 3)

    # (batch=2, seq=8, hidden=32): evenly divisible -> no-pad lane-dense path.
    x1 = jax.random.normal(k1, (2, 8, 32), dtype=jnp.float32)
    # Ragged shape: exercises the pad-to-width / slice-back tail path.
    x2 = jax.random.normal(k2, (3, 5, 97), dtype=jnp.float32)
    # bf16 path (bf16-native compute).
    x3 = jax.random.normal(k3, (2, 8, 128), dtype=jnp.bfloat16)

    for x, tol in ((x1, 1e-5), (x2, 1e-5), (x3, 2e-2)):
        y = gelu(x)
        jax.block_until_ready(y)
        y_ref = _gelu_ref(x)
        assert y.shape == x.shape and y.dtype == x.dtype
        assert jnp.allclose(y.astype(jnp.float32), y_ref.astype(jnp.float32),
                            atol=tol, rtol=tol), "mismatch vs reference"

    print("KERNEL_OK")
</pallas_src>

<mosaic_0001>
module attributes {stable_mosaic.version = 11 : i64} {
  func.func @_gelu_kernel(%arg0: i32, %arg1: memref<1x512xf32, #tpu.memory_space<vmem>>, %arg2: memref<1x512xf32, #tpu.memory_space<vmem>>) attributes {dimension_semantics = [#tpu.dimension_semantics<parallel>], iteration_bounds = array<i64: 1>, scalar_prefetch = 0 : i64, scratch_operands = 0 : i64, tpu.core_type = #tpu.core_type<tc>, window_params = [{transform_indices = @transform_0, window_bounds = array<i64: 1, 512>}, {transform_indices = @transform_1, window_bounds = array<i64: 1, 512>}]} {
    %c0 = arith.constant 0 : index
    %c0_0 = arith.constant 0 : index
    %0 = vector.load %arg1[%c0, %c0_0] : memref<1x512xf32, #tpu.memory_space<vmem>>, vector<1x512xf32>
    %1 = arith.mulf %0, %0 : vector<1x512xf32>
    %2 = arith.mulf %1, %0 : vector<1x512xf32>
    %cst = arith.constant 4.471500e-02 : f32
    %3 = vector.broadcast %cst : f32 to vector<1x512xf32>
    %4 = arith.mulf %3, %2 : vector<1x512xf32>
    %5 = arith.addf %0, %4 : vector<1x512xf32>
    %cst_1 = arith.constant 0.797884583 : f32
    %6 = vector.broadcast %cst_1 : f32 to vector<1x512xf32>
    %7 = arith.mulf %6, %5 : vector<1x512xf32>
    %cst_2 = arith.constant 5.000000e-01 : f32
    %8 = vector.broadcast %cst_2 : f32 to vector<1x512xf32>
    %9 = arith.mulf %8, %0 : vector<1x512xf32>
    %10 = math.tanh %7 : vector<1x512xf32>
    %cst_3 = arith.constant 1.000000e+00 : f32
    %11 = vector.broadcast %cst_3 : f32 to vector<1x512xf32>
    %12 = arith.addf %11, %10 : vector<1x512xf32>
    %13 = arith.mulf %9, %12 : vector<1x512xf32>
    %c0_4 = arith.constant 0 : index
    %c0_5 = arith.constant 0 : index
    %14 = vector.load %arg2[%c0_4, %c0_5] : memref<1x512xf32, #tpu.memory_space<vmem>>, vector<1x512xf32>
    tpu.vector_store %arg2[%c0_4, %c0_5], %13 {strides = array<i32>} : memref<1x512xf32, #tpu.memory_space<vmem>>, vector<1x512xf32>,
    return
  }
  func.func @transform_0(%arg0: i32) -> (i32, i32) {
    %c0_i32 = arith.constant 0 : i32
    %c0_i32_0 = arith.constant 0 : i32
    return %arg0, %c0_i32 : i32, i32
  }
  func.func @transform_1(%arg0: i32) -> (i32, i32) {
    %c0_i32 = arith.constant 0 : i32
    %c0_i32_0 = arith.constant 0 : i32
    return %arg0, %c0_i32 : i32, i32
  }
}

</mosaic_0001>

<llo_original>
// kernel: tpu_custom_call.1
$region0: #{tpu_custom_call.1}
  #allocation0 [shape = 'u32[]', space=smem, size = 0x4, offset = 0x4, fixed_abs, tag = 'smem constant byte address 0x4 - core index']
  #allocation1 [shape = 'u32[72,128]{1,0:T(1,128)}', space=vmem, size = 0x9000, scoped, tag = 'internal scratch']
  %s0 = inlined_call_operand.hbm [shape: f32[1,512], index: 0, kind: input, shape index: {}]
  %s1 = inlined_call_operand.hbm [shape: f32[1,512], index: 1, kind: output, shape index: {}]
  %s2 = sld [smem:[#allocation0]]
  $region18: #{tpu_custom_call.1} parent=0
    _
  %s4 = ssub.s32 1, %s2
  %s5 = scalar_select 0, %s4, %s2
  $region1: #{tpu_custom_call.1} parent=0
    #allocation2 [shape = 'u8[2048]{0}', space=vmem, size = 0x800, scoped, tag = 'input window, operand 0, single buffered']
    #allocation3 [shape = 's32[1]{0}', space=sflag, size = 0x4, scoped, tag = 'scoped memory for tpu_custom_call.1']
    #allocation4 [shape = 's32[1]{0}', space=sflag, size = 0x4, scoped, tag = 'scoped memory for tpu_custom_call.1']
    #allocation5 [shape = 'u8[2048]{0}', space=vmem, size = 0x800, scoped, tag = 'output window, operand 0, single buffered']
    %6 = vsyncpa [#allocation3], 0
    %7 = vsyncpa [#allocation4], 0
    // Predicated region
    $region2: #{tpu_custom_call.1} parent=1 // pred_check
      _
    $region3: #{tpu_custom_call.1} parent=1 // pred_check_branch
      %9 = sbr.rel (0) target = $region5
    $region4: #{tpu_custom_call.1} parent=1 // pred_region
      %11 = vsyncadd [#allocation3], 0
      %s13 = sshll.u32 %s0, 4
      %s14 = int_to_ptr.hbm [resolvable:$true] %s13
      %s15 = sshll.u32 [#allocation2], 4
      %s16 = int_to_ptr.vmem [resolvable:$true] %s15
      %18 = dma.hbm_to_vmem [thread:$0]  %s14, 64, %s16, [#allocation3]
    $region5: #{tpu_custom_call.1} parent=1 // pred_fallthru
      _
    // Predicated region
    $region6: #{tpu_custom_call.1} parent=1 // pred_check
      _
    $region7: #{tpu_custom_call.1} parent=1 // pred_check_branch
      %20 = sbr.rel (0) target = $region9
    $region8: #{tpu_custom_call.1} parent=1 // pred_region
      %22 = dma.done [#allocation3], 64
    $region9: #{tpu_custom_call.1} parent=1 // pred_fallthru
      _
    %v23 = vld [vmem:[#allocation2] sm:$0xf]
    %v24 = vmul.f32 %v23, %v23
    %v25 = vmul.f32 %v24, %v23
    %v26 = vmul.f32 %v25, 0.044715
    %v27 = vadd.f32 %v23, %v26
    %v28 = vmul.f32 %v27, 0.7978846
    %v29 = vmul.f32 %v23, 0.5
    %v30 = vtanh.pop %v28
    %v31 = vadd.f32 %v30, 1.0
    %v32 = vmul.f32 %v29, %v31
    %v33 = vlaneseq
    %vm34 = vcmp.ge.s32.totalorder %v33, 0
    %vm35 = vcmp.lt.s32.totalorder %v33, 512
    %vm36 = vmand %vm34, %vm35
    %37 = vst.msk [vmem:[#allocation5] sm:$0xf] %vm36, %v32
    // Predicated region
    $region10: #{tpu_custom_call.1} parent=1 // pred_check
      _
    $region11: #{tpu_custom_call.1} parent=1 // pred_check_branch
      %39 = sbr.rel (0) target = $region13
    $region12: #{tpu_custom_call.1} parent=1 // pred_region
      %41 = vsyncadd [#allocation4], 0
      %s43 = sshll.u32 [#allocation5], 4
      %s44 = int_to_ptr.vmem [resolvable:$true] %s43
      %s45 = sshll.u32 %s1, 4
      %s46 = int_to_ptr.hbm [resolvable:$true] %s45
      %48 = dma.vmem_to_hbm [thread:$0]  %s44, 64, %s46, [#allocation4]
    $region13: #{tpu_custom_call.1} parent=1 // pred_fallthru
      _
    // Predicated region
    $region14: #{tpu_custom_call.1} parent=1 // pred_check
      _
    $region15: #{tpu_custom_call.1} parent=1 // pred_check_branch
      %50 = sbr.rel (0) target = $region17
    $region16: #{tpu_custom_call.1} parent=1 // pred_region
      %52 = dma.done [#allocation4], 64
    $region17: #{tpu_custom_call.1} parent=1 // pred_fallthru
      _
    %53 = vsyncpa [#allocation3], 1
    %54 = vsyncpa [#allocation4], 1

</llo_original>
